<compile_context>
chip_gen: v6e
topology: v6e:2x2x1
jax: 0.10.0
libtpu: 0.0.40
codegen_flags: <defaults>
</compile_context>

<pallas_src>
import jax
import jax.numpy as jnp
from jax.experimental import pallas as pl
from jax.experimental.pallas import tpu as pltpu


_TARGET_ROWS = 1024               # rows per grid step fed to the MXU (multiple of 256)
_VMEM_BUDGET = 20 * 1024 * 1024   # per-step working set; fits every generation's scoped VMEM


def _round_up(n, m):
    return ((n + m - 1) // m) * m


def _step_bytes(tb, tn, x_dim, y_dim, max_w, in_bytes, cd_bytes):
    """Rough per-grid-step VMEM working set (double-buffered inputs + live acts)."""
    rows = tb * tn
    stream = 2 * rows * (x_dim + y_dim) * in_bytes       # x/y tiles, double buffered
    acts = rows * max_w * (4 + cd_bytes)                 # f32 slab + compute-dtype copy
    return stream + acts


def _choose_tiles(B, N, x_dim, y_dim, max_w, in_bytes, cd_bytes,
                  block_batch, block_obs):
    """Pick (TB, TN) as a function of both B and N under a VMEM budget."""
    if block_obs is not None:
        TN = _round_up(block_obs, 8)
    else:
        TN = min(_round_up(N, 8), _round_up(_TARGET_ROWS, 8))
    if block_batch is not None:
        TB = _round_up(block_batch, 8)
    else:
        TB = max(8, min(_round_up(B, 8),
                        _round_up(max(1, _TARGET_ROWS // TN), 8)))

    # Shrink auto-chosen tiles until the per-step working set fits the budget
    # (conservative so it holds on v7x's 64 MiB VMEM / 32 MiB scoped default and
    # v5e's 16 MiB scoped default once raised via vmem_limit_bytes).
    while (_step_bytes(TB, TN, x_dim, y_dim, max_w, in_bytes, cd_bytes) > _VMEM_BUDGET
           and ((block_obs is None and TN > 8) or (block_batch is None and TB > 8))):
        if block_obs is None and TN > 8:
            TN = _round_up(max(8, TN // 2), 8)
        elif block_batch is None and TB > 8:
            TB = _round_up(max(8, TB // 2), 8)
    return TB, TN


def _make_encoder_kernel(*, n_mid, TB, TN, N, N_pad, x_dim, y_dim,
                         use_vpu_first, compute_dtype):
    """Fused kernel: MLP -> masked obs-chunk reduction -> mean -> last linear."""
    rows = TB * TN
    inv_n = 1.0 / float(N)

    def kernel(x_ref, y_ref, w0x_ref, w0y_ref, b0_ref, *rest):
        # rest = [W1, b1, ..., W_{n_mid}, b_{n_mid}, W_last, b_last, out_ref, acc_ref]
        mid_refs = rest[:2 * n_mid]
        w_last_ref = rest[2 * n_mid]
        b_last_ref = rest[2 * n_mid + 1]
        out_ref = rest[2 * n_mid + 2]
        acc_ref = rest[2 * n_mid + 3]

        j = pl.program_id(1)                     # obs-chunk (reduction) index

        # (TB, TN, d) -> (TB*TN, d): leading-dims-only collapse, TN % 8 == 0,
        # last dim untouched -> no lane movement.
        x2 = x_ref[...].reshape(rows, x_dim)
        y2 = y_ref[...].reshape(rows, y_dim)

        # ---- first hidden layer ----
        if use_vpu_first:
            # K = x_dim + y_dim is tiny: VPU broadcast multiply-adds in f32
            # (avoids two padded tiny-K MXU passes and any x/y concat).
            h = b0_ref[...]                                  # (1, H0) f32
            for k in range(x_dim):
                h = h + x2[:, k:k + 1].astype(jnp.float32) * w0x_ref[k:k + 1, :]
            for k in range(y_dim):
                h = h + y2[:, k:k + 1].astype(jnp.float32) * w0y_ref[k:k + 1, :]
        else:
            # Large-K fallback: split-weight MXU dots (== Linear on concat(x, y)).
            h = jnp.dot(x2.astype(compute_dtype), w0x_ref[...],
                        preferred_element_type=jnp.float32)
            h = h + jnp.dot(y2.astype(compute_dtype), w0y_ref[...],
                            preferred_element_type=jnp.float32)
            h = h + b0_ref[...]
        h = jnp.maximum(h, 0.0)                              # (rows, H0) f32

        # ---- remaining hidden layers: bf16 MXU inputs, f32 accumulation ----
        for i in range(n_mid):
            w = mid_refs[2 * i][...]                         # compute_dtype
            b = mid_refs[2 * i + 1][...]                     # f32
            h = jnp.dot(h.astype(compute_dtype), w,
                        preferred_element_type=jnp.float32) + b
            h = jnp.maximum(h, 0.0)

        # ---- per-batch partial sum of hidden activations over this obs chunk ----
        hh = h.shape[-1]
        h3 = h.reshape(TB, TN, hh)                           # tile-aligned split
        if N_pad != N:
            # Mask zero-padded observation rows (they carry ReLU(b0)-derived
            # garbage through the MLP); scale stays 1/N (true N).
            obs = j * TN + jax.lax.broadcasted_iota(jnp.int32, (TB, TN, 1), 1)
            h3 = jnp.where(obs < N, h3, 0.0)
        part = jnp.sum(h3, axis=1)                           # (TB, hh) — XLU/VPU, no MXU

        @pl.when(j == 0)
        def _init():
            acc_ref[...] = jnp.zeros_like(acc_ref)

        acc_ref[...] += part

        # ---- finalize: mean, then last linear (mean hoisted above the layer) ----
        @pl.when(j == pl.num_programs(1) - 1)
        def _finalize():
            rep_h = acc_ref[...] * inv_n                     # (TB, hh) f32
            rep = jnp.dot(rep_h.astype(compute_dtype), w_last_ref[...],
                          preferred_element_type=jnp.float32)
            out_ref[...] = (rep + b_last_ref[...]).astype(out_ref.dtype)

    return kernel


def deterministic_encoder_forward(context_x, context_y, params, *,
                                  block_batch=None, block_obs=None,
                                  compute_dtype=jnp.bfloat16):
    """Deterministic_Encoder forward via Pallas.

    params: dict with keys
        'layers' : list of (W, b) for the hidden MLP layers, W (in, out), b (1, out)
        'last'   : (W_last, b_last) mapping layer_sizes[-1] -> num_latents
    Returns (rep, None) with rep of shape (B, num_latents) in float32.
    """
    assert context_x.ndim == 3 and context_y.ndim == 3
    B, N, x_dim = context_x.shape
    By, Ny, y_dim = context_y.shape
    assert (B, N) == (By, Ny), "context_x / context_y batch/obs mismatch"

    layer_params = params["layers"]
    n_mid = len(layer_params) - 1
    w_last, b_last = params["last"]
    L = w_last.shape[1]
    H0 = layer_params[0][0].shape[1]
    hidden_widths = [w.shape[1] for (w, _b) in layer_params]
    H_last = hidden_widths[-1]

    use_vpu_first = (x_dim + y_dim) <= 16
    first_dtype = jnp.float32 if use_vpu_first else compute_dtype

    in_bytes = jnp.dtype(context_x.dtype).itemsize
    cd_bytes = jnp.dtype(compute_dtype).itemsize
    max_w = max(hidden_widths)

    TB, TN = _choose_tiles(B, N, x_dim, y_dim, max_w, in_bytes, cd_bytes,
                           block_batch, block_obs)
    B_pad = _round_up(B, TB)
    N_pad = _round_up(N, TN)

    pad_b, pad_n = B_pad - B, N_pad - N
    if pad_b or pad_n:
        context_x = jnp.pad(context_x, ((0, pad_b), (0, pad_n), (0, 0)))
        context_y = jnp.pad(context_y, ((0, pad_b), (0, pad_n), (0, 0)))

    # Weight prep: split first-layer weight (no x/y concat anywhere), cast the
    # MXU-facing weights to the compute dtype once; biases stay f32.
    w0, b0 = layer_params[0]
    w0x = w0[:x_dim].astype(first_dtype)
    w0y = w0[x_dim:].astype(first_dtype)
    b0 = b0.reshape(1, -1).astype(jnp.float32)
    flat_weights = [w0x, w0y, b0]
    for (w, b) in layer_params[1:]:
        flat_weights.append(w.astype(compute_dtype))
        flat_weights.append(b.reshape(1, -1).astype(jnp.float32))
    flat_weights.append(w_last.astype(compute_dtype))
    flat_weights.append(b_last.reshape(1, -1).astype(jnp.float32))

    kernel = _make_encoder_kernel(
        n_mid=n_mid, TB=TB, TN=TN, N=N, N_pad=N_pad,
        x_dim=x_dim, y_dim=y_dim, use_vpu_first=use_vpu_first,
        compute_dtype=compute_dtype)

    def resident_spec(arr):
        # Whole (small) weight/bias tensor resident across all grid steps.
        return pl.BlockSpec(arr.shape, lambda i, j: (0, 0))

    in_specs = [
        pl.BlockSpec((TB, TN, x_dim), lambda i, j: (i, j, 0)),
        pl.BlockSpec((TB, TN, y_dim), lambda i, j: (i, j, 0)),
    ] + [resident_spec(a) for a in flat_weights]

    out_specs = pl.BlockSpec((TB, L), lambda i, j: (i, 0))
    out_shape = jax.ShapeDtypeStruct((B_pad, L), jnp.float32)

    # Advisory cost estimate for the XLA scheduler.
    rows_total = B_pad * N_pad
    flops = 2 * rows_total * (x_dim + y_dim) * H0
    prev = H0
    for (w, _b) in layer_params[1:]:
        flops += 2 * rows_total * prev * w.shape[1]
        prev = w.shape[1]
    flops += rows_total * H_last               # obs-axis reduction
    flops += 2 * B_pad * H_last * L            # last linear, applied after the mean
    weight_bytes = sum(int(a.size) * jnp.dtype(a.dtype).itemsize for a in flat_weights)
    bytes_accessed = ((int(context_x.size) + int(context_y.size)) * in_bytes
                      + weight_bytes + B_pad * L * 4)
    cost = pl.CostEstimate(flops=int(flops), transcendentals=0,
                           bytes_accessed=int(bytes_accessed))

    # Raise the scoped-VMEM limit above the v5e 16 MiB default, but stay well
    # under v7x's 64 MiB physical VMEM.
    step_b = _step_bytes(TB, TN, x_dim, y_dim, max_w, in_bytes, cd_bytes)
    vmem_limit = int(min(max(32 * 1024 * 1024,
                             2 * (step_b + 2 * weight_bytes
                                  + TB * (L + H_last) * 4)),
                         48 * 1024 * 1024))

    rep = pl.pallas_call(
        kernel,
        out_shape=out_shape,
        grid_spec=pltpu.PrefetchScalarGridSpec(
            num_scalar_prefetch=0,
            grid=(B_pad // TB, N_pad // TN),   # (batch tiles, obs chunks)
            in_specs=in_specs,
            out_specs=out_specs,
            scratch_shapes=[pltpu.VMEM((TB, H_last), jnp.float32)],
        ),
        compiler_params=pltpu.CompilerParams(
            dimension_semantics=("parallel", "arbitrary"),
            vmem_limit_bytes=vmem_limit,
        ),
        cost_estimate=cost,
    )(context_x, context_y, *flat_weights)

    return rep[:B], None


def init_params(key, input_dim, layer_sizes, num_latents):
    """PyTorch-Linear-style init (uniform(-1/sqrt(fan_in), +1/sqrt(fan_in)))."""
    params = {"layers": []}
    dims = [input_dim] + list(layer_sizes)
    keys = jax.random.split(key, len(layer_sizes) + 1)
    for i in range(len(layer_sizes)):
        fan_in, fan_out = dims[i], dims[i + 1]
        bound = 1.0 / (fan_in ** 0.5)
        kw, kb = jax.random.split(keys[i])
        w = jax.random.uniform(kw, (fan_in, fan_out), jnp.float32, -bound, bound)
        b = jax.random.uniform(kb, (1, fan_out), jnp.float32, -bound, bound)
        params["layers"].append((w, b))

    h = layer_sizes[-1]
    bound = 1.0 / (h ** 0.5)
    kw, kb = jax.random.split(keys[-1])
    params["last"] = (
        jax.random.uniform(kw, (h, num_latents), jnp.float32, -bound, bound),
        jax.random.uniform(kb, (1, num_latents), jnp.float32, -bound, bound),
    )
    return params


def reference_forward(context_x, context_y, params):
    """Pure-JAX f32 reference implementing the exact torch forward semantics."""
    enc_in = jnp.concatenate([context_x, context_y], axis=-1)
    B, N, D = enc_in.shape
    h = enc_in.reshape(-1, D)
    for (w, b) in params["layers"]:
        h = jax.nn.relu(h @ w + b)
    w_last, b_last = params["last"]
    h = h @ w_last + b_last
    L = w_last.shape[1]
    rep = h.reshape(B, -1, L).mean(axis=-2)
    return rep, None


if __name__ == "__main__":
    key = jax.random.PRNGKey(0)
    x_dim, y_dim = 3, 1
    layer_sizes = [32, 32]
    num_latents = 16
    kx1, ky1, kp1, kx2, ky2, kp2 = jax.random.split(key, 6)

    # bf16 matmuls vs f32 reference -> relaxed tolerance.
    ATOL = RTOL = 2e-2

    # Case 1: N divides the obs tile (single reduction step, no mask).
    B1, N1 = 2, 8
    cx1 = jax.random.normal(kx1, (B1, N1, x_dim), jnp.float32)
    cy1 = jax.random.normal(ky1, (B1, N1, y_dim), jnp.float32)
    params1 = init_params(kp1, x_dim + y_dim, layer_sizes, num_latents)
    rep1, w1 = deterministic_encoder_forward(cx1, cy1, params1)
    rep1 = jax.block_until_ready(rep1)
    ref1, _ = reference_forward(cx1, cy1, params1)
    assert rep1.shape == (B1, num_latents), f"bad shape {rep1.shape}"
    assert w1 is None
    assert jnp.allclose(rep1, ref1, atol=ATOL, rtol=RTOL), "case-1 rep mismatch"

    # Case 2: odd B / odd N with a small obs chunk -> exercises batch padding,
    # obs padding + in-kernel mask, and the multi-step accumulator path.
    B2, N2 = 3, 12
    cx2 = jax.random.normal(kx2, (B2, N2, x_dim), jnp.float32)
    cy2 = jax.random.normal(ky2, (B2, N2, y_dim), jnp.float32)
    params2 = init_params(kp2, x_dim + y_dim, layer_sizes, num_latents)
    rep2, _ = deterministic_encoder_forward(cx2, cy2, params2, block_obs=8)
    rep2 = jax.block_until_ready(rep2)
    ref2, _ = reference_forward(cx2, cy2, params2)
    assert rep2.shape == (B2, num_latents), f"bad shape {rep2.shape}"
    assert jnp.allclose(rep2, ref2, atol=ATOL, rtol=RTOL), "case-2 rep mismatch"

    print("KERNEL_OK")
</pallas_src>

<mosaic_0001>
module attributes {stable_mosaic.version = 11 : i64} {
  func.func @kernel(%arg0: i32, %arg1: i32, %arg2: memref<8x8x3xf32, #tpu.memory_space<vmem>>, %arg3: memref<8x8x1xf32, #tpu.memory_space<vmem>>, %arg4: memref<3x32xf32, #tpu.memory_space<vmem>>, %arg5: memref<1x32xf32, #tpu.memory_space<vmem>>, %arg6: memref<1x32xf32, #tpu.memory_space<vmem>>, %arg7: memref<32x32xbf16, #tpu.memory_space<vmem>>, %arg8: memref<1x32xf32, #tpu.memory_space<vmem>>, %arg9: memref<32x16xbf16, #tpu.memory_space<vmem>>, %arg10: memref<1x16xf32, #tpu.memory_space<vmem>>, %arg11: memref<8x16xf32, #tpu.memory_space<vmem>>, %arg12: memref<8x32xf32, #tpu.memory_space<vmem>>) attributes {dimension_semantics = [#tpu.dimension_semantics<parallel>, #tpu.dimension_semantics<arbitrary>], iteration_bounds = array<i64: 1, 1>, scalar_prefetch = 0 : i64, scratch_operands = 1 : i64, tpu.core_type = #tpu.core_type<tc>, window_params = [{transform_indices = @transform_0, window_bounds = array<i64: 8, 8, 3>}, {transform_indices = @transform_1, window_bounds = array<i64: 8, 8, 1>}, {pipeline_mode = #tpu.pipeline_mode<synchronous>, transform_indices = @transform_2, window_bounds = array<i64: 3, 32>}, {pipeline_mode = #tpu.pipeline_mode<synchronous>, transform_indices = @transform_3, window_bounds = array<i64: 1, 32>}, {pipeline_mode = #tpu.pipeline_mode<synchronous>, transform_indices = @transform_4, window_bounds = array<i64: 1, 32>}, {pipeline_mode = #tpu.pipeline_mode<synchronous>, transform_indices = @transform_5, window_bounds = array<i64: 32, 32>}, {pipeline_mode = #tpu.pipeline_mode<synchronous>, transform_indices = @transform_6, window_bounds = array<i64: 1, 32>}, {pipeline_mode = #tpu.pipeline_mode<synchronous>, transform_indices = @transform_7, window_bounds = array<i64: 32, 16>}, {pipeline_mode = #tpu.pipeline_mode<synchronous>, transform_indices = @transform_8, window_bounds = array<i64: 1, 16>}, {transform_indices = @transform_9, window_bounds = array<i64: 8, 16>}]} {
    %c0 = arith.constant 0 : index
    %c0_0 = arith.constant 0 : index
    %c0_1 = arith.constant 0 : index
    %0 = vector.load %arg2[%c0, %c0_0, %c0_1] : memref<8x8x3xf32, #tpu.memory_space<vmem>>, vector<8x8x3xf32>
    %1 = vector.shape_cast %0 : vector<8x8x3xf32> to vector<64x3xf32>
    %c0_2 = arith.constant 0 : index
    %c0_3 = arith.constant 0 : index
    %c0_4 = arith.constant 0 : index
    %2 = vector.load %arg3[%c0_2, %c0_3, %c0_4] : memref<8x8x1xf32, #tpu.memory_space<vmem>>, vector<8x8x1xf32>
    %3 = vector.shape_cast %2 : vector<8x8x1xf32> to vector<64x1xf32>
    %c0_5 = arith.constant 0 : index
    %c0_6 = arith.constant 0 : index
    %4 = vector.load %arg6[%c0_5, %c0_6] : memref<1x32xf32, #tpu.memory_space<vmem>>, vector<1x32xf32>
    %5 = vector.extract_strided_slice %1 {offsets = [0, 0], sizes = [64, 1], strides = [1, 1]} : vector<64x3xf32> to vector<64x1xf32>
    %c0_7 = arith.constant 0 : index
    %c0_8 = arith.constant 0 : index
    %6 = vector.load %arg4[%c0_7, %c0_8] : memref<3x32xf32, #tpu.memory_space<vmem>>, vector<1x32xf32>
    %7 = vector.broadcast %5 : vector<64x1xf32> to vector<64x32xf32>
    %8 = vector.broadcast %6 : vector<1x32xf32> to vector<64x32xf32>
    %9 = arith.mulf %7, %8 : vector<64x32xf32>
    %10 = vector.broadcast %4 : vector<1x32xf32> to vector<64x32xf32>
    %11 = arith.addf %10, %9 : vector<64x32xf32>
    %12 = vector.extract_strided_slice %1 {offsets = [0, 1], sizes = [64, 1], strides = [1, 1]} : vector<64x3xf32> to vector<64x1xf32>
    %c1 = arith.constant 1 : index
    %c0_9 = arith.constant 0 : index
    %13 = vector.load %arg4[%c1, %c0_9] : memref<3x32xf32, #tpu.memory_space<vmem>>, vector<1x32xf32>
    %14 = vector.broadcast %12 : vector<64x1xf32> to vector<64x32xf32>
    %15 = vector.broadcast %13 : vector<1x32xf32> to vector<64x32xf32>
    %16 = arith.mulf %14, %15 : vector<64x32xf32>
    %17 = arith.addf %11, %16 : vector<64x32xf32>
    %18 = vector.extract_strided_slice %1 {offsets = [0, 2], sizes = [64, 1], strides = [1, 1]} : vector<64x3xf32> to vector<64x1xf32>
    %c2 = arith.constant 2 : index
    %c0_10 = arith.constant 0 : index
    %19 = vector.load %arg4[%c2, %c0_10] : memref<3x32xf32, #tpu.memory_space<vmem>>, vector<1x32xf32>
    %20 = vector.broadcast %18 : vector<64x1xf32> to vector<64x32xf32>
    %21 = vector.broadcast %19 : vector<1x32xf32> to vector<64x32xf32>
    %22 = arith.mulf %20, %21 : vector<64x32xf32>
    %23 = arith.addf %17, %22 : vector<64x32xf32>
    %c0_11 = arith.constant 0 : index
    %c0_12 = arith.constant 0 : index
    %24 = vector.load %arg5[%c0_11, %c0_12] : memref<1x32xf32, #tpu.memory_space<vmem>>, vector<1x32xf32>
    %25 = vector.broadcast %3 : vector<64x1xf32> to vector<64x32xf32>
    %26 = vector.broadcast %24 : vector<1x32xf32> to vector<64x32xf32>
    %27 = arith.mulf %25, %26 : vector<64x32xf32>
    %28 = arith.addf %23, %27 : vector<64x32xf32>
    %cst = arith.constant 0.000000e+00 : f32
    %29 = vector.broadcast %cst : f32 to vector<64x32xf32>
    %30 = arith.maximumf %28, %29 : vector<64x32xf32>
    %c0_13 = arith.constant 0 : index
    %c0_14 = arith.constant 0 : index
    %31 = vector.load %arg7[%c0_13, %c0_14] : memref<32x32xbf16, #tpu.memory_space<vmem>>, vector<32x32xbf16>
    %c0_15 = arith.constant 0 : index
    %c0_16 = arith.constant 0 : index
    %32 = vector.load %arg8[%c0_15, %c0_16] : memref<1x32xf32, #tpu.memory_space<vmem>>, vector<1x32xf32>
    %33 = arith.truncf %30 : vector<64x32xf32> to vector<64x32xbf16>
    %cst_17 = arith.constant dense<0.000000e+00> : vector<64x32xf32>
    %34 = tpu.matmul %33, %31, %cst_17 {dimension_numbers = #tpu.dot_dimension_numbers<[1], [0], [0], [1], [0, 0, 1, 1], [], []>} : vector<64x32xbf16>, vector<32x32xbf16>, vector<64x32xf32> -> vector<64x32xf32>
    %35 = vector.broadcast %32 : vector<1x32xf32> to vector<64x32xf32>
    %36 = arith.addf %34, %35 : vector<64x32xf32>
    %cst_18 = arith.constant 0.000000e+00 : f32
    %37 = vector.broadcast %cst_18 : f32 to vector<64x32xf32>
    %38 = arith.maximumf %36, %37 : vector<64x32xf32>
    %39 = vector.shape_cast %38 : vector<64x32xf32> to vector<8x8x32xf32>
    %cst_19 = arith.constant dense<0.000000e+00> : vector<8x32xf32>
    %40 = vector.multi_reduction <add>, %39, %cst_19 [1] : vector<8x8x32xf32> to vector<8x32xf32>
    %c0_i32 = arith.constant 0 : i32
    %41 = arith.cmpi eq, %arg1, %c0_i32 : i32
    %42 = arith.extui %41 : i1 to i32
    %c0_i32_20 = arith.constant 0 : i32
    %43 = arith.cmpi ne, %42, %c0_i32_20 : i32
    scf.if %43 {
      %cst_27 = arith.constant 0.000000e+00 : f32
      %50 = vector.broadcast %cst_27 : f32 to vector<8x32xf32>
      %c0_28 = arith.constant 0 : index
      %c0_29 = arith.constant 0 : index
      %51 = vector.load %arg12[%c0_28, %c0_29] : memref<8x32xf32, #tpu.memory_space<vmem>>, vector<8x32xf32>
      tpu.vector_store %arg12[%c0_28, %c0_29], %50 {strides = array<i32>} : memref<8x32xf32, #tpu.memory_space<vmem>>, vector<8x32xf32>,
    } else {
    }
    %c0_21 = arith.constant 0 : index
    %c0_22 = arith.constant 0 : index
    %44 = vector.load %arg12[%c0_21, %c0_22] : memref<8x32xf32, #tpu.memory_space<vmem>>, vector<8x32xf32>
    %45 = arith.addf %44, %40 : vector<8x32xf32>
    %c0_23 = arith.constant 0 : index
    %c0_24 = arith.constant 0 : index
    %46 = vector.load %arg12[%c0_23, %c0_24] : memref<8x32xf32, #tpu.memory_space<vmem>>, vector<8x32xf32>
    tpu.vector_store %arg12[%c0_23, %c0_24], %45 {strides = array<i32>} : memref<8x32xf32, #tpu.memory_space<vmem>>, vector<8x32xf32>,
    %c0_i32_25 = arith.constant 0 : i32
    %47 = arith.cmpi eq, %arg1, %c0_i32_25 : i32
    %48 = arith.extui %47 : i1 to i32
    %c0_i32_26 = arith.constant 0 : i32
    %49 = arith.cmpi ne, %48, %c0_i32_26 : i32
    scf.if %49 {
      %c0_27 = arith.constant 0 : index
      %c0_28 = arith.constant 0 : index
      %50 = vector.load %arg12[%c0_27, %c0_28] : memref<8x32xf32, #tpu.memory_space<vmem>>, vector<8x32xf32>
      %cst_29 = arith.constant 1.250000e-01 : f32
      %51 = vector.broadcast %cst_29 : f32 to vector<8x32xf32>
      %52 = arith.mulf %50, %51 : vector<8x32xf32>
      %53 = arith.truncf %52 : vector<8x32xf32> to vector<8x32xbf16>
      %c0_30 = arith.constant 0 : index
      %c0_31 = arith.constant 0 : index
      %54 = vector.load %arg9[%c0_30, %c0_31] : memref<32x16xbf16, #tpu.memory_space<vmem>>, vector<32x16xbf16>
      %cst_32 = arith.constant dense<0.000000e+00> : vector<8x16xf32>
      %55 = tpu.matmul %53, %54, %cst_32 {dimension_numbers = #tpu.dot_dimension_numbers<[1], [0], [0], [1], [0, 0, 1, 1], [], []>} : vector<8x32xbf16>, vector<32x16xbf16>, vector<8x16xf32> -> vector<8x16xf32>
      %c0_33 = arith.constant 0 : index
      %c0_34 = arith.constant 0 : index
      %56 = vector.load %arg10[%c0_33, %c0_34] : memref<1x16xf32, #tpu.memory_space<vmem>>, vector<1x16xf32>
      %57 = vector.broadcast %56 : vector<1x16xf32> to vector<8x16xf32>
      %58 = arith.addf %55, %57 : vector<8x16xf32>
      %c0_35 = arith.constant 0 : index
      %c0_36 = arith.constant 0 : index
      %59 = vector.load %arg11[%c0_35, %c0_36] : memref<8x16xf32, #tpu.memory_space<vmem>>, vector<8x16xf32>
      tpu.vector_store %arg11[%c0_35, %c0_36], %58 {strides = array<i32>} : memref<8x16xf32, #tpu.memory_space<vmem>>, vector<8x16xf32>,
    } else {
    }
    return
  }
  func.func @transform_0(%arg0: i32, %arg1: i32) -> (i32, i32, i32) {
    %c0_i32 = arith.constant 0 : i32
    %c0_i32_0 = arith.constant 0 : i32
    return %arg0, %arg1, %c0_i32 : i32, i32, i32
  }
  func.func @transform_1(%arg0: i32, %arg1: i32) -> (i32, i32, i32) {
    %c0_i32 = arith.constant 0 : i32
    %c0_i32_0 = arith.constant 0 : i32
    return %arg0, %arg1, %c0_i32 : i32, i32, i32
  }
  func.func @transform_2(%arg0: i32, %arg1: i32) -> (i32, i32) {
    %c0_i32 = arith.constant 0 : i32
    %c0_i32_0 = arith.constant 0 : i32
    %c0_i32_1 = arith.constant 0 : i32
    return %c0_i32, %c0_i32_0 : i32, i32
  }
  func.func @transform_3(%arg0: i32, %arg1: i32) -> (i32, i32) {
    %c0_i32 = arith.constant 0 : i32
    %c0_i32_0 = arith.constant 0 : i32
    %c0_i32_1 = arith.constant 0 : i32
    return %c0_i32, %c0_i32_0 : i32, i32
  }
  func.func @transform_4(%arg0: i32, %arg1: i32) -> (i32, i32) {
    %c0_i32 = arith.constant 0 : i32
    %c0_i32_0 = arith.constant 0 : i32
    %c0_i32_1 = arith.constant 0 : i32
    return %c0_i32, %c0_i32_0 : i32, i32
  }
  func.func @transform_5(%arg0: i32, %arg1: i32) -> (i32, i32) {
    %c0_i32 = arith.constant 0 : i32
    %c0_i32_0 = arith.constant 0 : i32
    %c0_i32_1 = arith.constant 0 : i32
    return %c0_i32, %c0_i32_0 : i32, i32
  }
  func.func @transform_6(%arg0: i32, %arg1: i32) -> (i32, i32) {
    %c0_i32 = arith.constant 0 : i32
    %c0_i32_0 = arith.constant 0 : i32
    %c0_i32_1 = arith.constant 0 : i32
    return %c0_i32, %c0_i32_0 : i32, i32
  }
  func.func @transform_7(%arg0: i32, %arg1: i32) -> (i32, i32) {
    %c0_i32 = arith.constant 0 : i32
    %c0_i32_0 = arith.constant 0 : i32
    %c0_i32_1 = arith.constant 0 : i32
    return %c0_i32, %c0_i32_0 : i32, i32
  }
  func.func @transform_8(%arg0: i32, %arg1: i32) -> (i32, i32) {
    %c0_i32 = arith.constant 0 : i32
    %c0_i32_0 = arith.constant 0 : i32
    %c0_i32_1 = arith.constant 0 : i32
    return %c0_i32, %c0_i32_0 : i32, i32
  }
  func.func @transform_9(%arg0: i32, %arg1: i32) -> (i32, i32) {
    %c0_i32 = arith.constant 0 : i32
    %c0_i32_0 = arith.constant 0 : i32
    return %arg0, %c0_i32 : i32, i32
  }
}

</mosaic_0001>

<llo_original>
// kernel: tpu_custom_call.1
$region0: #{tpu_custom_call.1}
  #allocation0 [shape = 'u32[]', space=smem, size = 0x4, offset = 0x4, fixed_abs, tag = 'smem constant byte address 0x4 - core index']
  #allocation1 [shape = 'u32[144,128]{1,0:T(1,128)}', space=vmem, size = 0x12000, scoped, tag = 'internal scratch']
  #allocation2 [shape = 'f32[8,32]{1,0:T(8,128)}', space=vmem, size = 0x1000, scoped, tag = 'scratch operand']
  %s0 = inlined_call_operand.vmem [shape: f32[8,8,3], index: 0, kind: input, shape index: {}]
  %s1 = inlined_call_operand.vmem [shape: f32[8,8,1], index: 1, kind: input, shape index: {}]
  %s2 = inlined_call_operand.vmem [shape: f32[3,32], index: 2, kind: input, shape index: {}]
  %s3 = inlined_call_operand.vmem [shape: f32[1,32], index: 3, kind: input, shape index: {}]
  %s4 = inlined_call_operand.vmem [shape: f32[1,32], index: 4, kind: input, shape index: {}]
  %s5 = inlined_call_operand.vmem [shape: bf16[32,32], index: 5, kind: input, shape index: {}]
  %s6 = inlined_call_operand.vmem [shape: f32[1,32], index: 6, kind: input, shape index: {}]
  %s7 = inlined_call_operand.vmem [shape: bf16[32,16], index: 7, kind: input, shape index: {}]
  %s8 = inlined_call_operand.vmem [shape: f32[1,16], index: 8, kind: input, shape index: {}]
  %s9 = inlined_call_operand.hbm [shape: f32[8,16], index: 9, kind: output, shape index: {}]
  %s10 = sld [smem:[#allocation0]]
  $region54: #{tpu_custom_call.1} parent=0
    _
  %s12 = ssub.s32 1, %s10
  %s13 = scalar_select 0, %s12, %s10
  $region1: #{tpu_custom_call.1} parent=0
    #allocation3 [shape = 'u8[4096]{0}', space=vmem, size = 0x1000, scoped, tag = 'output window, operand 0, single buffered']
    #allocation4 [shape = 's32[1]{0}', space=sflag, size = 0x4, scoped, tag = 'scoped memory for tpu_custom_call.1']
    %14 = vsyncpa [#allocation4], 0
    // Predicated region
    $region2: #{tpu_custom_call.1} parent=1 // pred_check
      _
    $region3: #{tpu_custom_call.1} parent=1 // pred_check_branch
      %16 = sbr.rel (0) target = $region5
    $region4: #{tpu_custom_call.1} parent=1 // pred_region
      _
    $region5: #{tpu_custom_call.1} parent=1 // pred_fallthru
      _
    // Predicated region
    $region6: #{tpu_custom_call.1} parent=1 // pred_check
      _
    $region7: #{tpu_custom_call.1} parent=1 // pred_check_branch
      %18 = sbr.rel (0) target = $region9
    $region8: #{tpu_custom_call.1} parent=1 // pred_region
      _
    $region9: #{tpu_custom_call.1} parent=1 // pred_fallthru
      _
    // Predicated region
    $region10: #{tpu_custom_call.1} parent=1 // pred_check
      _
    $region11: #{tpu_custom_call.1} parent=1 // pred_check_branch
      %20 = sbr.rel (0) target = $region13
    $region12: #{tpu_custom_call.1} parent=1 // pred_region
      _
    $region13: #{tpu_custom_call.1} parent=1 // pred_fallthru
      _
    // Predicated region
    $region14: #{tpu_custom_call.1} parent=1 // pred_check
      _
    $region15: #{tpu_custom_call.1} parent=1 // pred_check_branch
      %22 = sbr.rel (0) target = $region17
    $region16: #{tpu_custom_call.1} parent=1 // pred_region
      _
    $region17: #{tpu_custom_call.1} parent=1 // pred_fallthru
      _
    // Predicated region
    $region18: #{tpu_custom_call.1} parent=1 // pred_check
      _
    $region19: #{tpu_custom_call.1} parent=1 // pred_check_branch
      %24 = sbr.rel (0) target = $region21
    $region20: #{tpu_custom_call.1} parent=1 // pred_region
      _
    $region21: #{tpu_custom_call.1} parent=1 // pred_fallthru
      _
    // Predicated region
    $region22: #{tpu_custom_call.1} parent=1 // pred_check
      _
    $region23: #{tpu_custom_call.1} parent=1 // pred_check_branch
      %26 = sbr.rel (0) target = $region25
    $region24: #{tpu_custom_call.1} parent=1 // pred_region
      _
    $region25: #{tpu_custom_call.1} parent=1 // pred_fallthru
      _
    // Predicated region
    $region26: #{tpu_custom_call.1} parent=1 // pred_check
      _
    $region27: #{tpu_custom_call.1} parent=1 // pred_check_branch
      %28 = sbr.rel (0) target = $region29
    $region28: #{tpu_custom_call.1} parent=1 // pred_region
      _
    $region29: #{tpu_custom_call.1} parent=1 // pred_fallthru
      _
    // Predicated region
    $region30: #{tpu_custom_call.1} parent=1 // pred_check
      _
    $region31: #{tpu_custom_call.1} parent=1 // pred_check_branch
      %30 = sbr.rel (0) target = $region33
    $region32: #{tpu_custom_call.1} parent=1 // pred_region
      _
    $region33: #{tpu_custom_call.1} parent=1 // pred_fallthru
      _
    // Predicated region
    $region34: #{tpu_custom_call.1} parent=1 // pred_check
      _
    $region35: #{tpu_custom_call.1} parent=1 // pred_check_branch
      %32 = sbr.rel (0) target = $region37
    $region36: #{tpu_custom_call.1} parent=1 // pred_region
      _
    $region37: #{tpu_custom_call.1} parent=1 // pred_fallthru
      _
    %v34 = vld [vmem:[%s0] sm:$0xff]
    %v35 = vld [vmem:[%s0 + $0x8] sm:$0xff]
    %v36 = vld [vmem:[%s0 + $0x10] sm:$0xff]
    %v37 = vld [vmem:[%s0 + $0x18] sm:$0xff]
    %v38 = vld [vmem:[%s0 + $0x20] sm:$0xff]
    %v39 = vld [vmem:[%s0 + $0x28] sm:$0xff]
    %v40 = vld [vmem:[%s0 + $0x30] sm:$0xff]
    %v41 = vld [vmem:[%s0 + $0x38] sm:$0xff]
    %v42 = vld [vmem:[%s1] sm:$0xff]
    %v43 = vld [vmem:[%s1 + $0x8] sm:$0xff]
    %v44 = vld [vmem:[%s1 + $0x10] sm:$0xff]
    %v45 = vld [vmem:[%s1 + $0x18] sm:$0xff]
    %v46 = vld [vmem:[%s1 + $0x20] sm:$0xff]
    %v47 = vld [vmem:[%s1 + $0x28] sm:$0xff]
    %v48 = vld [vmem:[%s1 + $0x30] sm:$0xff]
    %v49 = vld [vmem:[%s1 + $0x38] sm:$0xff]
    %v50 = vld [vmem:[%s4] sm:$0x1]
    %v51 = vld [vmem:[%s2] sm:$0x1]
    %53 = vset.pattern.permute.xlu0 0
    %54 = vperm.xlu0 %53, %v34
    %v55 = vpop.permute.xlu0 %54
    %58 = vset.pattern.permute.xlu0 0
    %59 = vperm.xlu0 %58, %v35
    %v60 = vpop.permute.xlu0 %59
    %63 = vset.pattern.permute.xlu0 0
    %64 = vperm.xlu0 %63, %v36
    %v65 = vpop.permute.xlu0 %64
    %68 = vset.pattern.permute.xlu0 0
    %69 = vperm.xlu0 %68, %v37
    %v70 = vpop.permute.xlu0 %69
    %73 = vset.pattern.permute.xlu0 0
    %74 = vperm.xlu0 %73, %v38
    %v75 = vpop.permute.xlu0 %74
    %78 = vset.pattern.permute.xlu0 0
    %79 = vperm.xlu0 %78, %v39
    %v80 = vpop.permute.xlu0 %79
    %83 = vset.pattern.permute.xlu0 0
    %84 = vperm.xlu0 %83, %v40
    %v85 = vpop.permute.xlu0 %84
    %88 = vset.pattern.permute.xlu0 0
    %89 = vperm.xlu0 %88, %v41
    %v90 = vpop.permute.xlu0 %89
    %v92 = vlaneseq
    %v93 = vshrl.u32 %v92, 7
    %v94 = vsub.s32 0, %v93
    %v95 = vrot.slane %v51, %v94
    %v96 = vmul.f32 %v55, %v95
    %v97 = vmul.f32 %v60, %v95
    %v98 = vmul.f32 %v65, %v95
    %v99 = vmul.f32 %v70, %v95
    %v100 = vmul.f32 %v75, %v95
    %v101 = vmul.f32 %v80, %v95
    %v102 = vmul.f32 %v85, %v95
    %v103 = vmul.f32 %v90, %v95
    %v105 = vlaneseq
    %v106 = vshrl.u32 %v105, 7
    %v107 = vsub.s32 0, %v106
    %v108 = vrot.slane %v50, %v107
    %v110 = vadd.f32 %v108, %v96
    %v111 = vadd.f32 %v108, %v97
    %v112 = vadd.f32 %v108, %v98
    %v113 = vadd.f32 %v108, %v99
    %v114 = vadd.f32 %v108, %v100
    %v115 = vadd.f32 %v108, %v101
    %v116 = vadd.f32 %v108, %v102
    %v117 = vadd.f32 %v108, %v103
    %v118 = vld [vmem:[%s2 + $0x1] sm:$0x1]
    %119 = vset.pattern.permute.xlu0 1
    %120 = vperm.xlu0 %119, %v34
    %v121 = vpop.permute.xlu0 %120
    %123 = vset.pattern.permute.xlu0 1
    %124 = vperm.xlu0 %123, %v35
    %v125 = vpop.permute.xlu0 %124
    %127 = vset.pattern.permute.xlu0 1
    %128 = vperm.xlu0 %127, %v36
    %v129 = vpop.permute.xlu0 %128
    %131 = vset.pattern.permute.xlu0 1
    %132 = vperm.xlu0 %131, %v37
    %v133 = vpop.permute.xlu0 %132
    %135 = vset.pattern.permute.xlu0 1
    %136 = vperm.xlu0 %135, %v38
    %v137 = vpop.permute.xlu0 %136
    %139 = vset.pattern.permute.xlu0 1
    %140 = vperm.xlu0 %139, %v39
    %v141 = vpop.permute.xlu0 %140
    %143 = vset.pattern.permute.xlu0 1
    %144 = vperm.xlu0 %143, %v40
    %v145 = vpop.permute.xlu0 %144
    %147 = vset.pattern.permute.xlu0 1
    %148 = vperm.xlu0 %147, %v41
    %v149 = vpop.permute.xlu0 %148
    %v151 = vlaneseq
    %v152 = vshrl.u32 %v151, 7
    %v153 = vsub.s32 0, %v152
    %v154 = vrot.slane %v118, %v153
    %v155 = vmul.f32 %v121, %v154
    %v156 = vmul.f32 %v125, %v154
    %v157 = vmul.f32 %v129, %v154
    %v158 = vmul.f32 %v133, %v154
    %v159 = vmul.f32 %v137, %v154
    %v160 = vmul.f32 %v141, %v154
    %v161 = vmul.f32 %v145, %v154
    %v162 = vmul.f32 %v149, %v154
    %v163 = vadd.f32 %v110, %v155
    %v164 = vadd.f32 %v111, %v156
    %v165 = vadd.f32 %v112, %v157
    %v166 = vadd.f32 %v113, %v158
    %v167 = vadd.f32 %v114, %v159
    %v168 = vadd.f32 %v115, %v160
    %v169 = vadd.f32 %v116, %v161
    %v170 = vadd.f32 %v117, %v162
    %v171 = vld [vmem:[%s2 + $0x2] sm:$0x1]
    %172 = vset.pattern.permute.xlu0 2
    %173 = vperm.xlu0 %172, %v34
    %v174 = vpop.permute.xlu0 %173
    %176 = vset.pattern.permute.xlu0 2
    %177 = vperm.xlu0 %176, %v35
    %v178 = vpop.permute.xlu0 %177
    %180 = vset.pattern.permute.xlu0 2
    %181 = vperm.xlu0 %180, %v36
    %v182 = vpop.permute.xlu0 %181
    %184 = vset.pattern.permute.xlu0 2
    %185 = vperm.xlu0 %184, %v37
    %v186 = vpop.permute.xlu0 %185
    %188 = vset.pattern.permute.xlu0 2
    %189 = vperm.xlu0 %188, %v38
    %v190 = vpop.permute.xlu0 %189
    %192 = vset.pattern.permute.xlu0 2
    %193 = vperm.xlu0 %192, %v39
    %v194 = vpop.permute.xlu0 %193
    %196 = vset.pattern.permute.xlu0 2
    %197 = vperm.xlu0 %196, %v40
    %v198 = vpop.permute.xlu0 %197
    %200 = vset.pattern.permute.xlu0 2
    %201 = vperm.xlu0 %200, %v41
    %v202 = vpop.permute.xlu0 %201
    %v204 = vlaneseq
    %v205 = vshrl.u32 %v204, 7
    %v206 = vsub.s32 0, %v205
    %v207 = vrot.slane %v171, %v206
    %v208 = vmul.f32 %v174, %v207
    %v209 = vmul.f32 %v178, %v207
    %v210 = vmul.f32 %v182, %v207
    %v211 = vmul.f32 %v186, %v207
    %v212 = vmul.f32 %v190, %v207
    %v213 = vmul.f32 %v194, %v207
    %v214 = vmul.f32 %v198, %v207
    %v215 = vmul.f32 %v202, %v207
    %v216 = vadd.f32 %v163, %v208
    %v217 = vadd.f32 %v164, %v209
    %v218 = vadd.f32 %v165, %v210
    %v219 = vadd.f32 %v166, %v211
    %v220 = vadd.f32 %v167, %v212
    %v221 = vadd.f32 %v168, %v213
    %v222 = vadd.f32 %v169, %v214
    %v223 = vadd.f32 %v170, %v215
    %v224 = vld [vmem:[%s3] sm:$0x1]
    %226 = vset.pattern.permute.xlu0 0
    %227 = vperm.xlu0 %226, %v42
    %v228 = vpop.permute.xlu0 %227
    %231 = vset.pattern.permute.xlu0 0
    %232 = vperm.xlu0 %231, %v43
    %v233 = vpop.permute.xlu0 %232
    %236 = vset.pattern.permute.xlu0 0
    %237 = vperm.xlu0 %236, %v44
    %v238 = vpop.permute.xlu0 %237
    %241 = vset.pattern.permute.xlu0 0
    %242 = vperm.xlu0 %241, %v45
    %v243 = vpop.permute.xlu0 %242
    %246 = vset.pattern.permute.xlu0 0
    %247 = vperm.xlu0 %246, %v46
    %v248 = vpop.permute.xlu0 %247
    %251 = vset.pattern.permute.xlu0 0
    %252 = vperm.xlu0 %251, %v47
    %v253 = vpop.permute.xlu0 %252
    %256 = vset.pattern.permute.xlu0 0
    %257 = vperm.xlu0 %256, %v48
    %v258 = vpop.permute.xlu0 %257
    %261 = vset.pattern.permute.xlu0 0
    %262 = vperm.xlu0 %261, %v49
    %v263 = vpop.permute.xlu0 %262
    %v266 = vlaneseq
    %v267 = vshrl.u32 %v266, 7
    %v268 = vsub.s32 0, %v267
    %v269 = vrot.slane %v224, %v268
    %v271 = vmul.f32 %v228, %v269
    %v272 = vmul.f32 %v233, %v269
    %v273 = vmul.f32 %v238, %v269
    %v274 = vmul.f32 %v243, %v269
    %v275 = vmul.f32 %v248, %v269
    %v276 = vmul.f32 %v253, %v269
    %v277 = vmul.f32 %v258, %v269
    %v278 = vmul.f32 %v263, %v269
    %v279 = vadd.f32 %v216, %v271
    %v280 = vadd.f32 %v217, %v272
    %v281 = vadd.f32 %v218, %v273
    %v282 = vadd.f32 %v219, %v274
    %v283 = vadd.f32 %v220, %v275
    %v284 = vadd.f32 %v221, %v276
    %v285 = vadd.f32 %v222, %v277
    %v286 = vadd.f32 %v223, %v278
    %v287 = vmax.f32 %v279, 0.0
    %v288 = vmax.f32 %v280, 0.0
    %v289 = vmax.f32 %v281, 0.0
    %v290 = vmax.f32 %v282, 0.0
    %v291 = vmax.f32 %v283, 0.0
    %v292 = vmax.f32 %v284, 0.0
    %v293 = vmax.f32 %v285, 0.0
    %v294 = vmax.f32 %v286, 0.0
    %v295 = vld [vmem:[%s5] sm:$0xf]
    %v296 = vld [vmem:[%s5 + $0x4] sm:$0xf]
    %v297 = vld [vmem:[%s5 + $0x8] sm:$0xf]
    %v298 = vld [vmem:[%s5 + $0xc] sm:$0xf]
    %v299 = vld [vmem:[%s6] sm:$0x1]
    %v300 = vpack.c.bf16 %v288, %v287
    %v301 = vpack.c.bf16 %v290, %v289
    %v302 = vpack.c.bf16 %v292, %v291
    %v303 = vpack.c.bf16 %v294, %v293
    %v305 = vlaneseq
    %v306 = vshrl.u32 %v305, 7
    %v307 = vsub.s32 0, %v306
    %v308 = vrot.slane %v299, %v307
    %v314 = vunpack.c.l.b16 %v295
    %v315 = vunpack.c.l.b16 %v296
    %v316 = vunpack.c.l.b16 %v297
    %v317 = vunpack.c.l.b16 %v298
    %v318 = vpack.c.b16 %v315, %v314
    %v319 = vpack.c.b16 %v317, %v316
    %vm322 = vcmask 261120
    %v324 = vsel %vm322, %v300, 0
    %v327 = vsel %vm322, %v301, 0
    %v330 = vsel %vm322, %v302, 0
    %v333 = vsel %vm322, %v303, 0
    %335 = vmatprep.subr.bf16.mxu0 0
    %336 = vmatpush1.bf16.msra.mxu0 0
    %337 = vmatprep.subr.bf16.mxu0 0
    %338 = vmatpush1.bf16.msra.mxu0 0
    %339 = vmatprep.subr.bf16.mxu0 0
    %340 = vmatpush1.bf16.msra.mxu0 0
    %341 = vmatprep.subr.bf16.mxu0 0
    %342 = vmatpush1.bf16.msra.mxu0 0
    %343 = vmatprep.subr.bf16.mxu0 0
    %344 = vmatpush1.bf16.msra.mxu0 0
    %345 = vmatprep.subr.bf16.mxu0 0
    %346 = vmatpush1.bf16.msra.mxu0 0
    %347 = vmatprep.subr.bf16.mxu0 0
    %348 = vmatpush1.bf16.msra.mxu0 %v319
    %349 = vmatprep.subr.bf16.mxu0 0
    %350 = vmatpush1.bf16.msra.mxu0 %v318
    %351 = vmatprep.subr.bf16.mxu0 0
    %352 = vmatpush2.bf16.msra.mxu0 0
    %353 = vmatprep.subr.bf16.mxu0 0
    %354 = vmatpush2.bf16.msra.mxu0 0
    %355 = vmatprep.subr.bf16.mxu0 0
    %356 = vmatpush2.bf16.msra.mxu0 0
    %357 = vmatprep.subr.bf16.mxu0 0
    %358 = vmatpush2.bf16.msra.mxu0 0
    %359 = vmatprep.subr.bf16.mxu0 0
    %360 = vmatpush2.bf16.msra.mxu0 0
    %361 = vmatprep.subr.bf16.mxu0 0
    %362 = vmatpush2.bf16.msra.mxu0 0
    %363 = vmatprep.subr.bf16.mxu0 0
    %364 = vmatpush2.bf16.msra.mxu0 0
    %365 = vmatprep.subr.bf16.mxu0 0
    %366 = vmatpush2.bf16.msra.mxu0 0
    %367 = vmatprep.mubr.bf16.mxu0 0
    %368 = vmatmul.mubr.bf16.gmra.mxu0 %v324
    %v369 = vpop.f32.mrf.mxu0
    %v370 = vadd.f32 %v308, %v369
    %v371 = vpop.f32.mrf.mxu0
    %v372 = vpop.f32.mrf.mxu0
    %v373 = vadd.f32 %v308, %v372
    %v374 = vpop.f32.mrf.mxu0
    %375 = vmatprep.mubr.bf16.mxu0 0
    %376 = vmatmul.mubr.bf16.gmra.mxu0 %v327
    %v377 = vpop.f32.mrf.mxu0
    %v378 = vadd.f32 %v308, %v377
    %v379 = vpop.f32.mrf.mxu0
    %v380 = vpop.f32.mrf.mxu0
    %v381 = vadd.f32 %v308, %v380
    %v382 = vpop.f32.mrf.mxu0
    %383 = vmatprep.mubr.bf16.mxu0 0
    %384 = vmatmul.mubr.bf16.gmra.mxu0 %v330
    %v385 = vpop.f32.mrf.mxu0
    %v386 = vadd.f32 %v308, %v385
    %v387 = vpop.f32.mrf.mxu0
    %v388 = vpop.f32.mrf.mxu0
    %v389 = vadd.f32 %v308, %v388
    %v390 = vpop.f32.mrf.mxu0
    %391 = vmatprep.mubr.bf16.mxu0 0
    %392 = vmatmul.mubr.bf16.gmra.mxu0 %v333
    %v393 = vpop.f32.mrf.mxu0
    %v394 = vadd.f32 %v308, %v393
    %v395 = vpop.f32.mrf.mxu0
    %v396 = vpop.f32.mrf.mxu0
    %v397 = vadd.f32 %v308, %v396
    %v398 = vpop.f32.mrf.mxu0
    %399 = vdwg.mxu0
    %v400 = vmax.f32 %v370, 0.0
    %v401 = vmax.f32 %v373, 0.0
    %v402 = vmax.f32 %v378, 0.0
    %v403 = vmax.f32 %v381, 0.0
    %v404 = vmax.f32 %v386, 0.0
    %v405 = vmax.f32 %v389, 0.0
    %v406 = vmax.f32 %v394, 0.0
    %v407 = vmax.f32 %v397, 0.0
    %v408 = vsel %vm322, %v400, 0.0
    %v409 = vrot.slane %v408, 4
    %v410 = vadd.f32 %v408, %v409
    %v411 = vrot.slane %v410, 2
    %v412 = vadd.f32 %v410, %v411
    %v413 = vrot.slane %v412, 1
    %v414 = vadd.f32 %v412, %v413
    %v415 = vsel %vm322, %v401, 0.0
    %v416 = vrot.slane %v415, 4
    %v417 = vadd.f32 %v415, %v416
    %v418 = vrot.slane %v417, 2
    %v419 = vadd.f32 %v417, %v418
    %v420 = vrot.slane %v419, 1
    %v421 = vadd.f32 %v419, %v420
    %v422 = vsel %vm322, %v402, 0.0
    %v423 = vrot.slane %v422, 4
    %v424 = vadd.f32 %v422, %v423
    %v425 = vrot.slane %v424, 2
    %v426 = vadd.f32 %v424, %v425
    %v427 = vrot.slane %v426, 1
    %v428 = vadd.f32 %v426, %v427
    %v429 = vsel %vm322, %v403, 0.0
    %v430 = vrot.slane %v429, 4
    %v431 = vadd.f32 %v429, %v430
    %v432 = vrot.slane %v431, 2
    %v433 = vadd.f32 %v431, %v432
    %v434 = vrot.slane %v433, 1
    %v435 = vadd.f32 %v433, %v434
    %v436 = vsel %vm322, %v404, 0.0
    %v437 = vrot.slane %v436, 4
    %v438 = vadd.f32 %v436, %v437
    %v439 = vrot.slane %v438, 2
    %v440 = vadd.f32 %v438, %v439
    %v441 = vrot.slane %v440, 1
    %v442 = vadd.f32 %v440, %v441
    %v443 = vsel %vm322, %v405, 0.0
    %v444 = vrot.slane %v443, 4
    %v445 = vadd.f32 %v443, %v444
    %v446 = vrot.slane %v445, 2
    %v447 = vadd.f32 %v445, %v446
    %v448 = vrot.slane %v447, 1
    %v449 = vadd.f32 %v447, %v448
    %v450 = vsel %vm322, %v406, 0.0
    %v451 = vrot.slane %v450, 4
    %v452 = vadd.f32 %v450, %v451
    %v453 = vrot.slane %v452, 2
    %v454 = vadd.f32 %v452, %v453
    %v455 = vrot.slane %v454, 1
    %v456 = vadd.f32 %v454, %v455
    %v457 = vsel %vm322, %v407, 0.0
    %v458 = vrot.slane %v457, 4
    %v459 = vadd.f32 %v457, %v458
    %v460 = vrot.slane %v459, 2
    %v461 = vadd.f32 %v459, %v460
    %v462 = vrot.slane %v461, 1
    %v463 = vadd.f32 %v461, %v462
    %p464 = scmp.eq.s32.totalorder 0, 0
    // Predicated region
    $region38: #{tpu_custom_call.1} parent=1 // pred_check
      %p465 = pneg %p464
    $region39: #{tpu_custom_call.1} parent=1 // pred_check_branch
      %467 = sbr.rel (%p465) target = $region41
    $region40: #{tpu_custom_call.1} parent=1 // pred_region
      %468 = vst.msk [vmem:[#allocation2] sm:$0xff] %vm322, 0.0
    $region41: #{tpu_custom_call.1} parent=1 // pred_fallthru
      _
    %v469 = vld [vmem:[#allocation2] sm:$0xff]
    %vm478 = vcmask 1041409
    %v479 = vsel %vm478, %v421, %v414
    %vm480 = vcmask 1042434
    %v481 = vsel %vm480, %v428, %v479
    %vm482 = vcmask 1043459
    %v483 = vsel %vm482, %v435, %v481
    %vm484 = vcmask 1044484
    %v485 = vsel %vm484, %v442, %v483
    %vm486 = vcmask 1045509
    %v487 = vsel %vm486, %v449, %v485
    %vm488 = vcmask 1046534
    %v489 = vsel %vm488, %v456, %v487
    %vm490 = vcmask 1047559
    %v491 = vsel %vm490, %v463, %v489
    %v493 = vadd.f32 %v469, %v491
    %494 = vst.msk [vmem:[#allocation2] sm:$0xff] %vm322, %v493
    // Predicated region
    $region42: #{tpu_custom_call.1} parent=1 // pred_check
      %p495 = pneg %p464
    $region43: #{tpu_custom_call.1} parent=1 // pred_check_branch
      %497 = sbr.rel (%p495) target = $region45
    $region44: #{tpu_custom_call.1} parent=1 // pred_region
      %v498 = vld [vmem:[#allocation2] sm:$0xff]
      %v499 = vmul.f32 %v498, 0.125
      %v500 = vpack.c.bf16 %v499, %v499
      %v501 = vld [vmem:[%s7] sm:$0xf]
      %v502 = vld [vmem:[%s7 + $0x4] sm:$0xf]
      %v503 = vld [vmem:[%s7 + $0x8] sm:$0xf]
      %v504 = vld [vmem:[%s7 + $0xc] sm:$0xf]
      %v505 = vld [vmem:[%s8] sm:$0x1]
      %v507 = vlaneseq
      %v508 = vshrl.u32 %v507, 7
      %v509 = vsub.s32 0, %v508
      %v510 = vrot.slane %v505, %v509
      %v516 = vunpack.c.l.b16 %v501
      %v517 = vunpack.c.l.b16 %v502
      %v518 = vunpack.c.l.b16 %v503
      %v519 = vunpack.c.l.b16 %v504
      %v520 = vpack.c.b16 %v517, %v516
      %v521 = vpack.c.b16 %v519, %v518
      %v525 = vsel %vm322, %v500, 0
      %527 = vmatprep.subr.bf16.mxu0 0
      %528 = vmatpush1.bf16.msra.mxu0 0
      %529 = vmatprep.subr.bf16.mxu0 0
      %530 = vmatpush1.bf16.msra.mxu0 0
      %531 = vmatprep.subr.bf16.mxu0 0
      %532 = vmatpush1.bf16.msra.mxu0 0
      %533 = vmatprep.subr.bf16.mxu0 0
      %534 = vmatpush1.bf16.msra.mxu0 0
      %535 = vmatprep.subr.bf16.mxu0 0
      %536 = vmatpush1.bf16.msra.mxu0 0
      %537 = vmatprep.subr.bf16.mxu0 0
      %538 = vmatpush1.bf16.msra.mxu0 0
      %539 = vmatprep.subr.bf16.mxu0 0
      %540 = vmatpush1.bf16.msra.mxu0 %v521
      %541 = vmatprep.subr.bf16.mxu0 0
      %542 = vmatpush1.bf16.msra.mxu0 %v520
      %543 = vmatprep.subr.bf16.mxu0 0
      %544 = vmatpush2.bf16.msra.mxu0 0
      %545 = vmatprep.subr.bf16.mxu0 0
      %546 = vmatpush2.bf16.msra.mxu0 0
      %547 = vmatprep.subr.bf16.mxu0 0
      %548 = vmatpush2.bf16.msra.mxu0 0
      %549 = vmatprep.subr.bf16.mxu0 0
      %550 = vmatpush2.bf16.msra.mxu0 0
      %551 = vmatprep.subr.bf16.mxu0 0
      %552 = vmatpush2.bf16.msra.mxu0 0
      %553 = vmatprep.subr.bf16.mxu0 0
      %554 = vmatpush2.bf16.msra.mxu0 0
      %555 = vmatprep.subr.bf16.mxu0 0
      %556 = vmatpush2.bf16.msra.mxu0 0
      %557 = vmatprep.subr.bf16.mxu0 0
      %558 = vmatpush2.bf16.msra.mxu0 0
      %559 = vmatprep.mubr.bf16.mxu0 0
      %560 = vmatmul.mubr.bf16.gmra.mxu0 %v525
      %v561 = vpop.f32.mrf.mxu0
      %v562 = vadd.f32 %v510, %v561
      %v563 = vpop.f32.mrf.mxu0
      %v564 = vpop.f32.mrf.mxu0
      %v565 = vpop.f32.mrf.mxu0
      %566 = vdwg.mxu0
      %vm567 = vcmask 130048
      %568 = vst.msk [vmem:[#allocation3] sm:$0xff] %vm567, %v562
    $region45: #{tpu_custom_call.1} parent=1 // pred_fallthru
      _
    // Predicated region
    $region46: #{tpu_custom_call.1} parent=1 // pred_check
      _
    $region47: #{tpu_custom_call.1} parent=1 // pred_check_branch
      %570 = sbr.rel (0) target = $region49
    $region48: #{tpu_custom_call.1} parent=1 // pred_region
      %s572 = ssub.s32 128, 128
      %573 = vsyncadd [#allocation4], %s572
      %s575 = sshll.u32 [#allocation3], 4
      %s576 = int_to_ptr.vmem [resolvable:$true] %s575
      %578 = dma.vmem_to_hbm [thread:$0]  %s576, 128, %s9, [#allocation4]
    $region49: #{tpu_custom_call.1} parent=1 // pred_fallthru
      _
    // Predicated region
    $region50: #{tpu_custom_call.1} parent=1 // pred_check
      _
    $region51: #{tpu_custom_call.1} parent=1 // pred_check_branch
      %580 = sbr.rel (0) target = $region53
    $region52: #{tpu_custom_call.1} parent=1 // pred_region
      %581 = dma.done [#allocation4], 128
    $region53: #{tpu_custom_call.1} parent=1 // pred_fallthru
      _
    %582 = vsyncpa [#allocation4], 1

</llo_original>
